<compile_context>
chip_gen: v6e
topology: v6e:2x2x1
jax: 0.10.0
libtpu: 0.0.40
codegen_flags: <defaults>
</compile_context>

<pallas_src>
from functools import partial

import jax
import jax.numpy as jnp
import numpy as np
from jax.experimental import pallas as pl
from jax.experimental.pallas import tpu as pltpu


def _round_up(v, m):
    return ((v + m - 1) // m) * m


def _choose_tm(M, N, B, budget_bytes=24 << 20):
    """Largest row-block (multiple of 128) whose double-buffered tiles fit VMEM."""
    avail = budget_bytes - 4 * B * N * 4          # x.T + out.T blocks (double-buffered)
    tm_cap = max(128, avail // (2 * N * 4))       # double-buffered (tm, N) A block
    tm = min(tm_cap, _round_up(M, 128), 2048)
    return max(128, (tm // 128) * 128)


def _lpata_kernel(a_ref, xT_ref, o_ref, *, rho, sigma):
    k = pl.program_id(0)

    @pl.when(k == 0)
    def _():
        o_ref[...] = jnp.zeros_like(o_ref)

    a_blk = a_ref[...]                                   # (tm, N)
    xT = xT_ref[...]                                     # (B, N)

    # tmpT = (A_blk @ x).T = x.T @ A_blk.T  -> (B, tm); contract lane dims of both.
    tmpT = jax.lax.dot_general(
        xT, a_blk,
        dimension_numbers=(((1,), (1,)), ((), ())),
        preferred_element_type=jnp.float32,
    )
    # acc.T += tmpT @ A_blk  -> (B, N), accumulated directly in the resident output.
    o_ref[...] += jnp.dot(tmpT, a_blk, preferred_element_type=jnp.float32)

    @pl.when(k == pl.num_programs(0) - 1)
    def _():
        # out.T = rho * (A.T A x).T + sigma * x.T
        o_ref[...] = rho * o_ref[...] + sigma * xT


def lpata_func(A, AT, x, rho, sigma, *, tm=None):
    """out = AT @ (rho * (A @ x)) + sigma * x via a Pallas TPU kernel.

    AT is accepted for API parity with the PyTorch module but is not streamed
    by the kernel; it is assumed to equal A.T (as in the LP solver setup),
    which halves HBM traffic for the operator stream.
    """
    M, N = A.shape
    assert AT.shape == (N, M)

    squeeze = x.ndim == 1
    if squeeze:
        x = x[:, None]
    assert x.shape[0] == N
    B = x.shape[1]

    if tm is None:
        tm = _choose_tm(M, N, B)
    M_pad = _round_up(M, tm)
    if M_pad != M:
        # Zero rows of A do not change A.T @ (A @ x).
        A = jnp.pad(A, ((0, M_pad - M), (0, 0)))

    xT = x.T  # (B, N) lane-dense layout
    grid = (M_pad // tm,)
    kernel = partial(_lpata_kernel, rho=float(rho), sigma=float(sigma))

    outT = pl.pallas_call(
        kernel,
        out_shape=jax.ShapeDtypeStruct((B, N), jnp.float32),
        grid_spec=pltpu.PrefetchScalarGridSpec(
            num_scalar_prefetch=0,
            grid=grid,
            in_specs=[
                pl.BlockSpec((tm, N), lambda k: (k, 0)),    # A row-block
                pl.BlockSpec((B, N), lambda k: (0, 0)),     # x.T (resident)
            ],
            out_specs=pl.BlockSpec((B, N), lambda k: (0, 0)),  # out.T (resident accumulator)
        ),
        compiler_params=pltpu.CompilerParams(
            dimension_semantics=("arbitrary",),   # reduction over M row-blocks
            vmem_limit_bytes=48 << 20,            # headroom for larger tm on v5e/v6e/v7x
        ),
    )(A, xT)

    out = outT.T.astype(x.dtype)
    if squeeze:
        out = out[:, 0]
    return out


if __name__ == "__main__":
    # Deterministic synthetic parameters (module __init__ takes A, AT, rho, sigma).
    key = jax.random.PRNGKey(0)
    kA, kx = jax.random.split(key)

    M, N, B = 256, 128, 8        # small LP-sized problem
    rho, sigma = 0.5, 1e-1

    A = jax.random.normal(kA, (M, N), dtype=jnp.float32)
    AT = A.T                      # LPATA uses the transpose operator
    x = jax.random.normal(kx, (N, B), dtype=jnp.float32)

    out = lpata_func(A, AT, x, rho, sigma)
    out = jax.block_until_ready(out)

    # Pure-JAX reference.
    ref = AT @ (rho * (A @ x)) + sigma * x
    np.testing.assert_allclose(np.asarray(out), np.asarray(ref), rtol=1e-5, atol=1e-4)

    print("KERNEL_OK")
</pallas_src>

<mosaic_0001>
module attributes {stable_mosaic.version = 11 : i64} {
  func.func @_lpata_kernel(%arg0: i32, %arg1: memref<256x128xf32, #tpu.memory_space<vmem>>, %arg2: memref<8x128xf32, #tpu.memory_space<vmem>>, %arg3: memref<8x128xf32, #tpu.memory_space<vmem>>) attributes {dimension_semantics = [#tpu.dimension_semantics<arbitrary>], iteration_bounds = array<i64: 1>, scalar_prefetch = 0 : i64, scratch_operands = 0 : i64, tpu.core_type = #tpu.core_type<tc>, window_params = [{transform_indices = @transform_0, window_bounds = array<i64: 256, 128>}, {pipeline_mode = #tpu.pipeline_mode<synchronous>, transform_indices = @transform_1, window_bounds = array<i64: 8, 128>}, {pipeline_mode = #tpu.pipeline_mode<synchronous>, transform_indices = @transform_2, window_bounds = array<i64: 8, 128>}]} {
    %c0_i32 = arith.constant 0 : i32
    %0 = arith.cmpi eq, %arg0, %c0_i32 : i32
    %1 = arith.extui %0 : i1 to i32
    %c0_i32_0 = arith.constant 0 : i32
    %2 = arith.cmpi ne, %1, %c0_i32_0 : i32
    scf.if %2 {
      %cst_11 = arith.constant 0.000000e+00 : f32
      %13 = vector.broadcast %cst_11 : f32 to vector<8x128xf32>
      %c0_12 = arith.constant 0 : index
      %c0_13 = arith.constant 0 : index
      %14 = vector.load %arg3[%c0_12, %c0_13] : memref<8x128xf32, #tpu.memory_space<vmem>>, vector<8x128xf32>
      tpu.vector_store %arg3[%c0_12, %c0_13], %13 {strides = array<i32>} : memref<8x128xf32, #tpu.memory_space<vmem>>, vector<8x128xf32>,
    } else {
    }
    %c0 = arith.constant 0 : index
    %c0_1 = arith.constant 0 : index
    %3 = vector.load %arg1[%c0, %c0_1] : memref<256x128xf32, #tpu.memory_space<vmem>>, vector<256x128xf32>
    %c0_2 = arith.constant 0 : index
    %c0_3 = arith.constant 0 : index
    %4 = vector.load %arg2[%c0_2, %c0_3] : memref<8x128xf32, #tpu.memory_space<vmem>>, vector<8x128xf32>
    %cst = arith.constant dense<0.000000e+00> : vector<8x256xf32>
    %5 = tpu.matmul %4, %3, %cst {dimension_numbers = #tpu.dot_dimension_numbers<[1], [1], [0], [0], [0, 0, 1, 0], [], []>} : vector<8x128xf32>, vector<256x128xf32>, vector<8x256xf32> -> vector<8x256xf32>
    %c0_4 = arith.constant 0 : index
    %c0_5 = arith.constant 0 : index
    %6 = vector.load %arg3[%c0_4, %c0_5] : memref<8x128xf32, #tpu.memory_space<vmem>>, vector<8x128xf32>
    %cst_6 = arith.constant dense<0.000000e+00> : vector<8x128xf32>
    %7 = tpu.matmul %5, %3, %cst_6 {dimension_numbers = #tpu.dot_dimension_numbers<[1], [0], [0], [1], [0, 0, 1, 1], [], []>} : vector<8x256xf32>, vector<256x128xf32>, vector<8x128xf32> -> vector<8x128xf32>
    %8 = arith.addf %6, %7 : vector<8x128xf32>
    %c0_7 = arith.constant 0 : index
    %c0_8 = arith.constant 0 : index
    %9 = vector.load %arg3[%c0_7, %c0_8] : memref<8x128xf32, #tpu.memory_space<vmem>>, vector<8x128xf32>
    tpu.vector_store %arg3[%c0_7, %c0_8], %8 {strides = array<i32>} : memref<8x128xf32, #tpu.memory_space<vmem>>, vector<8x128xf32>,
    %c0_i32_9 = arith.constant 0 : i32
    %10 = arith.cmpi eq, %arg0, %c0_i32_9 : i32
    %11 = arith.extui %10 : i1 to i32
    %c0_i32_10 = arith.constant 0 : i32
    %12 = arith.cmpi ne, %11, %c0_i32_10 : i32
    scf.if %12 {
      %c0_11 = arith.constant 0 : index
      %c0_12 = arith.constant 0 : index
      %13 = vector.load %arg3[%c0_11, %c0_12] : memref<8x128xf32, #tpu.memory_space<vmem>>, vector<8x128xf32>
      %cst_13 = arith.constant 5.000000e-01 : f32
      %14 = vector.broadcast %cst_13 : f32 to vector<8x128xf32>
      %15 = arith.mulf %14, %13 : vector<8x128xf32>
      %cst_14 = arith.constant 1.000000e-01 : f32
      %16 = vector.broadcast %cst_14 : f32 to vector<8x128xf32>
      %17 = arith.mulf %16, %4 : vector<8x128xf32>
      %18 = arith.addf %15, %17 : vector<8x128xf32>
      %c0_15 = arith.constant 0 : index
      %c0_16 = arith.constant 0 : index
      %19 = vector.load %arg3[%c0_15, %c0_16] : memref<8x128xf32, #tpu.memory_space<vmem>>, vector<8x128xf32>
      tpu.vector_store %arg3[%c0_15, %c0_16], %18 {strides = array<i32>} : memref<8x128xf32, #tpu.memory_space<vmem>>, vector<8x128xf32>,
    } else {
    }
    return
  }
  func.func @transform_0(%arg0: i32) -> (i32, i32) {
    %c0_i32 = arith.constant 0 : i32
    %c0_i32_0 = arith.constant 0 : i32
    return %arg0, %c0_i32 : i32, i32
  }
  func.func @transform_1(%arg0: i32) -> (i32, i32) {
    %c0_i32 = arith.constant 0 : i32
    %c0_i32_0 = arith.constant 0 : i32
    %c0_i32_1 = arith.constant 0 : i32
    return %c0_i32, %c0_i32_0 : i32, i32
  }
  func.func @transform_2(%arg0: i32) -> (i32, i32) {
    %c0_i32 = arith.constant 0 : i32
    %c0_i32_0 = arith.constant 0 : i32
    %c0_i32_1 = arith.constant 0 : i32
    return %c0_i32, %c0_i32_0 : i32, i32
  }
}

</mosaic_0001>

<llo_original>
// kernel: tpu_custom_call.1
$region0: #{tpu_custom_call.1}
  #allocation0 [shape = 'u32[]', space=smem, size = 0x4, offset = 0x4, fixed_abs, tag = 'smem constant byte address 0x4 - core index']
  #allocation1 [shape = 'u32[144,128]{1,0:T(1,128)}', space=vmem, size = 0x12000, scoped, tag = 'internal scratch']
  %s0 = inlined_call_operand.hbm [shape: f32[256,128], index: 0, kind: input, shape index: {}]
  %s1 = inlined_call_operand.hbm [shape: f32[8,128], index: 1, kind: input, shape index: {}]
  %s2 = inlined_call_operand.hbm [shape: f32[8,128], index: 2, kind: output, shape index: {}]
  %s3 = sld [smem:[#allocation0]]
  $region34: #{tpu_custom_call.1} parent=0
    _
  %s5 = ssub.s32 1, %s3
  %s6 = scalar_select 0, %s5, %s3
  $region1: #{tpu_custom_call.1} parent=0
    #allocation2 [shape = 'u8[131072]{0}', space=vmem, size = 0x20000, scoped, tag = 'input window, operand 0, single buffered']
    #allocation3 [shape = 's32[1]{0}', space=sflag, size = 0x4, scoped, tag = 'scoped memory for tpu_custom_call.1']
    #allocation4 [shape = 's32[1]{0}', space=sflag, size = 0x4, scoped, tag = 'scoped memory for tpu_custom_call.1']
    #allocation5 [shape = 'u8[4096]{0}', space=vmem, size = 0x1000, scoped, tag = 'input window, operand 1, single buffered']
    #allocation6 [shape = 's32[1]{0}', space=sflag, size = 0x4, scoped, tag = 'scoped memory for tpu_custom_call.1']
    #allocation7 [shape = 'u8[4096]{0}', space=vmem, size = 0x1000, scoped, tag = 'output window, operand 0, single buffered']
    %7 = vsyncpa [#allocation3], 0
    %8 = vsyncpa [#allocation6], 0
    %9 = vsyncpa [#allocation4], 0
    // Predicated region
    $region2: #{tpu_custom_call.1} parent=1 // pred_check
      _
    $region3: #{tpu_custom_call.1} parent=1 // pred_check_branch
      %11 = sbr.rel (0) target = $region5
    $region4: #{tpu_custom_call.1} parent=1 // pred_region
      %s13 = ssub.s32 4096, 4096
      %14 = vsyncadd [#allocation3], %s13
      %s15 = sshll.u32 [#allocation2], 4
      %s16 = int_to_ptr.vmem [resolvable:$true] %s15
      %21 = dma.hbm_to_vmem [thread:$0]  %s0, 4096, %s16, [#allocation3], 128, 128, 8
    $region5: #{tpu_custom_call.1} parent=1 // pred_fallthru
      _
    // Predicated region
    $region6: #{tpu_custom_call.1} parent=1 // pred_check
      _
    $region7: #{tpu_custom_call.1} parent=1 // pred_check_branch
      %23 = sbr.rel (0) target = $region9
    $region8: #{tpu_custom_call.1} parent=1 // pred_region
      %s25 = ssub.s32 128, 128
      %26 = vsyncadd [#allocation6], %s25
      %s28 = sshll.u32 [#allocation5], 4
      %s29 = int_to_ptr.vmem [resolvable:$true] %s28
      %31 = dma.hbm_to_vmem [thread:$0]  %s1, 128, %s29, [#allocation6]
    $region9: #{tpu_custom_call.1} parent=1 // pred_fallthru
      _
    // Predicated region
    $region10: #{tpu_custom_call.1} parent=1 // pred_check
      _
    $region11: #{tpu_custom_call.1} parent=1 // pred_check_branch
      %33 = sbr.rel (0) target = $region13
    $region12: #{tpu_custom_call.1} parent=1 // pred_region
      %34 = dma.done [#allocation3], 4096
    $region13: #{tpu_custom_call.1} parent=1 // pred_fallthru
      _
    // Predicated region
    $region14: #{tpu_custom_call.1} parent=1 // pred_check
      _
    $region15: #{tpu_custom_call.1} parent=1 // pred_check_branch
      %36 = sbr.rel (0) target = $region17
    $region16: #{tpu_custom_call.1} parent=1 // pred_region
      %37 = dma.done [#allocation6], 128
    $region17: #{tpu_custom_call.1} parent=1 // pred_fallthru
      _
    %p38 = scmp.eq.s32.totalorder 0, 0
    // Predicated region
    $region18: #{tpu_custom_call.1} parent=1 // pred_check
      %p39 = pneg %p38
    $region19: #{tpu_custom_call.1} parent=1 // pred_check_branch
      %41 = sbr.rel (%p39) target = $region21
    $region20: #{tpu_custom_call.1} parent=1 // pred_region
      %42 = vst [vmem:[#allocation7] sm:$0xff] 0.0
    $region21: #{tpu_custom_call.1} parent=1 // pred_fallthru
      _
    %v43 = vld [vmem:[#allocation2] sm:$0xff]
    %v44 = vld [vmem:[#allocation2 + $0x8] sm:$0xff]
    %v45 = vld [vmem:[#allocation2 + $0x10] sm:$0xff]
    %v46 = vld [vmem:[#allocation2 + $0x18] sm:$0xff]
    %v47 = vld [vmem:[#allocation2 + $0x20] sm:$0xff]
    %v48 = vld [vmem:[#allocation2 + $0x28] sm:$0xff]
    %v49 = vld [vmem:[#allocation2 + $0x30] sm:$0xff]
    %v50 = vld [vmem:[#allocation2 + $0x38] sm:$0xff]
    %v51 = vld [vmem:[#allocation2 + $0x40] sm:$0xff]
    %v52 = vld [vmem:[#allocation2 + $0x48] sm:$0xff]
    %v53 = vld [vmem:[#allocation2 + $0x50] sm:$0xff]
    %v54 = vld [vmem:[#allocation2 + $0x58] sm:$0xff]
    %v55 = vld [vmem:[#allocation2 + $0x60] sm:$0xff]
    %v56 = vld [vmem:[#allocation2 + $0x68] sm:$0xff]
    %v57 = vld [vmem:[#allocation2 + $0x70] sm:$0xff]
    %v58 = vld [vmem:[#allocation2 + $0x78] sm:$0xff]
    %v59 = vld [vmem:[#allocation2 + $0x80] sm:$0xff]
    %v60 = vld [vmem:[#allocation2 + $0x88] sm:$0xff]
    %v61 = vld [vmem:[#allocation2 + $0x90] sm:$0xff]
    %v62 = vld [vmem:[#allocation2 + $0x98] sm:$0xff]
    %v63 = vld [vmem:[#allocation2 + $0xa0] sm:$0xff]
    %v64 = vld [vmem:[#allocation2 + $0xa8] sm:$0xff]
    %v65 = vld [vmem:[#allocation2 + $0xb0] sm:$0xff]
    %v66 = vld [vmem:[#allocation2 + $0xb8] sm:$0xff]
    %v67 = vld [vmem:[#allocation2 + $0xc0] sm:$0xff]
    %v68 = vld [vmem:[#allocation2 + $0xc8] sm:$0xff]
    %v69 = vld [vmem:[#allocation2 + $0xd0] sm:$0xff]
    %v70 = vld [vmem:[#allocation2 + $0xd8] sm:$0xff]
    %v71 = vld [vmem:[#allocation2 + $0xe0] sm:$0xff]
    %v72 = vld [vmem:[#allocation2 + $0xe8] sm:$0xff]
    %v73 = vld [vmem:[#allocation2 + $0xf0] sm:$0xff]
    %v74 = vld [vmem:[#allocation2 + $0xf8] sm:$0xff]
    %v75 = vld [vmem:[#allocation5] sm:$0xff]
    %76 = vmatprep.subr.mxu0 0.0
    %77 = vmatpush1.xpose.msra.mxu0 %v58
    %78 = vmatprep.subr.mxu0 0.0
    %79 = vmatpush1.xpose.msra.mxu0 %v57
    %80 = vmatprep.subr.mxu0 0.0
    %81 = vmatpush1.xpose.msra.mxu0 %v56
    %82 = vmatprep.subr.mxu0 0.0
    %83 = vmatpush1.xpose.msra.mxu0 %v55
    %84 = vmatprep.subr.mxu0 0.0
    %85 = vmatpush1.xpose.msra.mxu0 %v54
    %86 = vmatprep.subr.mxu0 0.0
    %87 = vmatpush1.xpose.msra.mxu0 %v53
    %88 = vmatprep.subr.mxu0 0.0
    %89 = vmatpush1.xpose.msra.mxu0 %v52
    %90 = vmatprep.subr.mxu0 0.0
    %91 = vmatpush1.xpose.msra.mxu0 %v51
    %92 = vmatprep.subr.mxu0 0.0
    %93 = vmatpush1.xpose.msra.mxu0 %v50
    %94 = vmatprep.subr.mxu0 0.0
    %95 = vmatpush1.xpose.msra.mxu0 %v49
    %96 = vmatprep.subr.mxu0 0.0
    %97 = vmatpush1.xpose.msra.mxu0 %v48
    %98 = vmatprep.subr.mxu0 0.0
    %99 = vmatpush1.xpose.msra.mxu0 %v47
    %100 = vmatprep.subr.mxu0 0.0
    %101 = vmatpush1.xpose.msra.mxu0 %v46
    %102 = vmatprep.subr.mxu0 0.0
    %103 = vmatpush1.xpose.msra.mxu0 %v45
    %104 = vmatprep.subr.mxu0 0.0
    %105 = vmatpush1.xpose.msra.mxu0 %v44
    %106 = vmatprep.subr.mxu0 0.0
    %107 = vmatpush1.xpose.msra.mxu0 %v43
    %108 = vmatprep.subr.mxu0 0.0
    %109 = vmatpush2.xpose.msra.mxu0 %v74
    %110 = vmatprep.subr.mxu0 0.0
    %111 = vmatpush2.xpose.msra.mxu0 %v73
    %112 = vmatprep.subr.mxu0 0.0
    %113 = vmatpush2.xpose.msra.mxu0 %v72
    %114 = vmatprep.subr.mxu0 0.0
    %115 = vmatpush2.xpose.msra.mxu0 %v71
    %116 = vmatprep.subr.mxu0 0.0
    %117 = vmatpush2.xpose.msra.mxu0 %v70
    %118 = vmatprep.subr.mxu0 0.0
    %119 = vmatpush2.xpose.msra.mxu0 %v69
    %120 = vmatprep.subr.mxu0 0.0
    %121 = vmatpush2.xpose.msra.mxu0 %v68
    %122 = vmatprep.subr.mxu0 0.0
    %123 = vmatpush2.xpose.msra.mxu0 %v67
    %124 = vmatprep.subr.mxu0 0.0
    %125 = vmatpush2.xpose.msra.mxu0 %v66
    %126 = vmatprep.subr.mxu0 0.0
    %127 = vmatpush2.xpose.msra.mxu0 %v65
    %128 = vmatprep.subr.mxu0 0.0
    %129 = vmatpush2.xpose.msra.mxu0 %v64
    %130 = vmatprep.subr.mxu0 0.0
    %131 = vmatpush2.xpose.msra.mxu0 %v63
    %132 = vmatprep.subr.mxu0 0.0
    %133 = vmatpush2.xpose.msra.mxu0 %v62
    %134 = vmatprep.subr.mxu0 0.0
    %135 = vmatpush2.xpose.msra.mxu0 %v61
    %136 = vmatprep.subr.mxu0 0.0
    %137 = vmatpush2.xpose.msra.mxu0 %v60
    %138 = vmatprep.subr.mxu0 0.0
    %139 = vmatpush2.xpose.msra.mxu0 %v59
    %140 = vmatprep.mubr.f32.mxu0 0.0
    %141 = vmatmul.mubr.f32.gmra.mxu0 %v75
    %v142 = vpop.f32.mrf.mxu0
    %v143 = vadd.f32 0.0, %v142
    %v144 = vpop.f32.mrf.mxu0
    %v145 = vadd.f32 0.0, %v144
    %146 = vdwg.mxu0
    %v147 = vld [vmem:[#allocation7] sm:$0xff]
    %148 = vmatprep.subr.mxu0 0.0
    %149 = vmatpush1.msra.mxu0 %v58
    %150 = vmatprep.subr.mxu0 0.0
    %151 = vmatpush1.msra.mxu0 %v57
    %152 = vmatprep.subr.mxu0 0.0
    %153 = vmatpush1.msra.mxu0 %v56
    %154 = vmatprep.subr.mxu0 0.0
    %155 = vmatpush1.msra.mxu0 %v55
    %156 = vmatprep.subr.mxu0 0.0
    %157 = vmatpush1.msra.mxu0 %v54
    %158 = vmatprep.subr.mxu0 0.0
    %159 = vmatpush1.msra.mxu0 %v53
    %160 = vmatprep.subr.mxu0 0.0
    %161 = vmatpush1.msra.mxu0 %v52
    %162 = vmatprep.subr.mxu0 0.0
    %163 = vmatpush1.msra.mxu0 %v51
    %164 = vmatprep.subr.mxu0 0.0
    %165 = vmatpush1.msra.mxu0 %v50
    %166 = vmatprep.subr.mxu0 0.0
    %167 = vmatpush1.msra.mxu0 %v49
    %168 = vmatprep.subr.mxu0 0.0
    %169 = vmatpush1.msra.mxu0 %v48
    %170 = vmatprep.subr.mxu0 0.0
    %171 = vmatpush1.msra.mxu0 %v47
    %172 = vmatprep.subr.mxu0 0.0
    %173 = vmatpush1.msra.mxu0 %v46
    %174 = vmatprep.subr.mxu0 0.0
    %175 = vmatpush1.msra.mxu0 %v45
    %176 = vmatprep.subr.mxu0 0.0
    %177 = vmatpush1.msra.mxu0 %v44
    %178 = vmatprep.subr.mxu0 0.0
    %179 = vmatpush1.msra.mxu0 %v43
    %180 = vmatprep.subr.mxu0 0.0
    %181 = vmatpush2.msra.mxu0 %v74
    %182 = vmatprep.subr.mxu0 0.0
    %183 = vmatpush2.msra.mxu0 %v73
    %184 = vmatprep.subr.mxu0 0.0
    %185 = vmatpush2.msra.mxu0 %v72
    %186 = vmatprep.subr.mxu0 0.0
    %187 = vmatpush2.msra.mxu0 %v71
    %188 = vmatprep.subr.mxu0 0.0
    %189 = vmatpush2.msra.mxu0 %v70
    %190 = vmatprep.subr.mxu0 0.0
    %191 = vmatpush2.msra.mxu0 %v69
    %192 = vmatprep.subr.mxu0 0.0
    %193 = vmatpush2.msra.mxu0 %v68
    %194 = vmatprep.subr.mxu0 0.0
    %195 = vmatpush2.msra.mxu0 %v67
    %196 = vmatprep.subr.mxu0 0.0
    %197 = vmatpush2.msra.mxu0 %v66
    %198 = vmatprep.subr.mxu0 0.0
    %199 = vmatpush2.msra.mxu0 %v65
    %200 = vmatprep.subr.mxu0 0.0
    %201 = vmatpush2.msra.mxu0 %v64
    %202 = vmatprep.subr.mxu0 0.0
    %203 = vmatpush2.msra.mxu0 %v63
    %204 = vmatprep.subr.mxu0 0.0
    %205 = vmatpush2.msra.mxu0 %v62
    %206 = vmatprep.subr.mxu0 0.0
    %207 = vmatpush2.msra.mxu0 %v61
    %208 = vmatprep.subr.mxu0 0.0
    %209 = vmatpush2.msra.mxu0 %v60
    %210 = vmatprep.subr.mxu0 0.0
    %211 = vmatpush2.msra.mxu0 %v59
    %212 = vmatprep.mubr.f32.mxu0 %v145
    %213 = vmatmul.mubr.f32.gmra.mxu0 %v143
    %v214 = vpop.f32.mrf.mxu0
    %v215 = vadd.f32 0.0, %v214
    %v216 = vpop.f32.mrf.mxu0
    %217 = vdwg.mxu0
    %v218 = vadd.f32 %v147, %v215
    %219 = vst [vmem:[#allocation7] sm:$0xff] %v218
    // Predicated region
    $region22: #{tpu_custom_call.1} parent=1 // pred_check
      %p220 = pneg %p38
    $region23: #{tpu_custom_call.1} parent=1 // pred_check_branch
      %222 = sbr.rel (%p220) target = $region25
    $region24: #{tpu_custom_call.1} parent=1 // pred_region
      %v223 = vld [vmem:[#allocation7] sm:$0xff]
      %v224 = vmul.f32 %v223, 0.5
      %v225 = vmul.f32 %v75, 0.1
      %v226 = vadd.f32 %v224, %v225
      %227 = vst [vmem:[#allocation7] sm:$0xff] %v226
    $region25: #{tpu_custom_call.1} parent=1 // pred_fallthru
      _
    // Predicated region
    $region26: #{tpu_custom_call.1} parent=1 // pred_check
      _
    $region27: #{tpu_custom_call.1} parent=1 // pred_check_branch
      %229 = sbr.rel (0) target = $region29
    $region28: #{tpu_custom_call.1} parent=1 // pred_region
      %s231 = ssub.s32 128, 128
      %232 = vsyncadd [#allocation4], %s231
      %s234 = sshll.u32 [#allocation7], 4
      %s235 = int_to_ptr.vmem [resolvable:$true] %s234
      %237 = dma.vmem_to_hbm [thread:$0]  %s235, 128, %s2, [#allocation4]
    $region29: #{tpu_custom_call.1} parent=1 // pred_fallthru
      _
    // Predicated region
    $region30: #{tpu_custom_call.1} parent=1 // pred_check
      _
    $region31: #{tpu_custom_call.1} parent=1 // pred_check_branch
      %239 = sbr.rel (0) target = $region33
    $region32: #{tpu_custom_call.1} parent=1 // pred_region
      %240 = dma.done [#allocation4], 128
    $region33: #{tpu_custom_call.1} parent=1 // pred_fallthru
      _
    %241 = vsyncpa [#allocation3], 1
    %242 = vsyncpa [#allocation6], 1
    %243 = vsyncpa [#allocation4], 1

</llo_original>
